<compile_context>
chip_gen: v7x
topology: tpu7x:2x2x1
jax: 0.10.0
libtpu: 0.0.40
codegen_flags: <defaults>
</compile_context>

<pallas_src>
import jax
import jax.numpy as jnp
from jax.experimental import pallas as pl
from jax.experimental.pallas import tpu as pltpu

# ---- model hyper-parameters (small synthetic sizes consistent with the module) ----
N = 128           # number of nodes (rows of data.x)
F_IN = 16         # dataset.num_features
HIDDEN = 32       # args.hidden
NUM_CLASSES = 8   # dataset.num_classes
KSIZE = 3         # args.kernel (odd -> "same" padding)
PAD = (KSIZE - 1) // 2


# ------------------------------ fused Pallas kernel --------------------------------
def _nlmlp_fused_kernel(xT_ref, w1_ref, b1_ref, w2_ref, b2_ref, wp_ref, bp_ref,
                        wc1_ref, bc1_ref, wc2_ref, bc2_ref, wl_ref, bl_ref,
                        o_ref):
    n = xT_ref.shape[1]

    # ---- MLP (channel-major): x1^T = lin2(relu(lin1(x)))^T ; g^T = proj(x1)^T ----
    hT = jnp.dot(w1_ref[...], xT_ref[...],
                 preferred_element_type=jnp.float32) + b1_ref[...]
    hT = jnp.maximum(hT, 0.0)                                              # relu(lin1)
    x1_T = jnp.dot(w2_ref[...], hT,
                   preferred_element_type=jnp.float32) + b2_ref[...]       # [C, N]
    g_row = jnp.dot(wp_ref[...], x1_T,
                    preferred_element_type=jnp.float32) + bp_ref[...]      # [1, N]

    # ---- in-kernel torch.sort replacement: stable ascending rank of g ------------
    # before[i, j] = 1  iff node j sorts strictly before node i  (stable: ties by index)
    col = jax.lax.broadcasted_iota(jnp.int32, (n, n), 1)                   # j on lanes
    row = jax.lax.broadcasted_iota(jnp.int32, (n, n), 0)                   # i on sublanes
    g_lane = jnp.broadcast_to(g_row, (n, n))                               # [i,j] = g[j]
    g_sub = jnp.transpose(g_lane)                                          # [i,j] = g[i] (bitwise same values)
    before = (g_lane < g_sub) | ((g_lane == g_sub) & (col < row))
    rank = jnp.sum(before.astype(jnp.float32), axis=1, keepdims=True)      # [N,1] exact small ints
    # sort permutation one-hot: perm[i, j] = 1 iff rank[i] == j  (i.e. sort_idx[j] == i).
    # Only `perm` stays live across the conv section.
    perm = (rank == col.astype(jnp.float32)).astype(jnp.float32)           # [N, N]

    # sorted_x^T = (g * x1)^T gathered into ascending-g order (exact 0/1 MXU gather)
    sorted_T = jnp.dot(x1_T * g_row, perm, preferred_element_type=jnp.float32)   # [C, N]

    # ---- conv1d -> relu -> conv1d_2 over the sorted node axis ("same" padding) ----
    lane = jax.lax.broadcasted_iota(jnp.int32, (1, n), 1)       # hoisted, shared by both layers

    def conv1d(inp_T, w_ref, b_ref):
        # out[:, i] = b + sum_j W[:, :, j] @ in[:, i + j - PAD] ; taps collapsed to one matmul
        taps = []
        for j in range(KSIZE):
            d = j - PAD
            if d == 0:
                taps.append(inp_T)
            else:
                shifted = pltpu.roll(inp_T, shift=(-d) % n, axis=1)        # lane roll
                valid = (lane + d >= 0) & (lane + d < n)                   # zero "same" padding
                taps.append(jnp.where(valid, shifted, 0.0))
        stacked = jnp.concatenate(taps, axis=0)                            # [K*C, N]
        return jnp.dot(w_ref[...], stacked,
                       preferred_element_type=jnp.float32) + b_ref[...]

    y_T = jnp.maximum(conv1d(sorted_T, wc1_ref, bc1_ref), 0.0)   # relu(conv1d(.)), dropout2 = id
    c2_T = conv1d(y_T, wc2_ref, bc2_ref)                         # conv1d_2

    # ---- un-sort: x2^T = c2^T @ perm^T  (inverse permutation == transpose) --------
    x2_T = jax.lax.dot_general(c2_T, perm, (((1,), (1,)), ((), ())),
                               preferred_element_type=jnp.float32)         # [C, N]

    # ---- head: lin(cat([x1, x2], dim=1)) then log_softmax over classes (sublanes) -
    z_T = jnp.dot(wl_ref[...], jnp.concatenate([x1_T, x2_T], axis=0),
                  preferred_element_type=jnp.float32) + bl_ref[...]        # [C, N]
    m = jnp.max(z_T, axis=0, keepdims=True)
    e = jnp.exp(z_T - m)
    s = jnp.sum(e, axis=0, keepdims=True)
    o_ref[...] = z_T - m - jnp.log(s)


# ------------------------------ parameter init -------------------------------------
def init_params(key):
    ks = jax.random.split(key, 12)

    def unif(k, shape, fan_in):
        bound = 1.0 / float(fan_in) ** 0.5
        return jax.random.uniform(k, shape, jnp.float32, -bound, bound)

    # torch nn.Linear layout: weight [out, in]; biases stored as columns for [C, N] math.
    w1 = unif(ks[0], (HIDDEN, F_IN), F_IN)
    b1 = unif(ks[1], (HIDDEN, 1), F_IN)
    w2 = unif(ks[2], (NUM_CLASSES, HIDDEN), HIDDEN)
    b2 = unif(ks[3], (NUM_CLASSES, 1), HIDDEN)
    wp = unif(ks[4], (1, NUM_CLASSES), NUM_CLASSES)              # proj.weight
    bp = unif(ks[5], (1, 1), NUM_CLASSES)                        # proj.bias

    cfan = NUM_CLASSES * KSIZE
    wc1 = unif(ks[6], (NUM_CLASSES, NUM_CLASSES, KSIZE), cfan)   # conv1d.weight [Cout,Cin,K]
    bc1 = unif(ks[7], (NUM_CLASSES, 1), cfan)
    wc2 = unif(ks[8], (NUM_CLASSES, NUM_CLASSES, KSIZE), cfan)
    bc2 = unif(ks[9], (NUM_CLASSES, 1), cfan)
    # Collapse the K taps into one contraction: W[c_out, j*C_in + c_in] = w[c_out, c_in, j]
    wc1_mat = jnp.transpose(wc1, (0, 2, 1)).reshape(NUM_CLASSES, KSIZE * NUM_CLASSES)
    wc2_mat = jnp.transpose(wc2, (0, 2, 1)).reshape(NUM_CLASSES, KSIZE * NUM_CLASSES)

    wl = unif(ks[10], (NUM_CLASSES, 2 * NUM_CLASSES), 2 * NUM_CLASSES)   # final lin
    bl = unif(ks[11], (NUM_CLASSES, 1), 2 * NUM_CLASSES)

    return dict(w1=w1, b1=b1, w2=w2, b2=b2, wp=wp, bp=bp,
                wc1=wc1_mat, bc1=bc1, wc2=wc2_mat, bc2=bc2, wl=wl, bl=bl)


# ------------------------------ forward wrapper -------------------------------------
def nlmlp_forward(params, x):
    # channel-major presentation of data.x (free layout plumbing in the wrapper)
    xT = jnp.transpose(x)                                        # [F_IN, N]

    vmem = pl.BlockSpec(memory_space=pltpu.MemorySpace.VMEM)     # whole-array VMEM residency
    out_T = pl.pallas_call(
        _nlmlp_fused_kernel,
        out_shape=jax.ShapeDtypeStruct((NUM_CLASSES, N), jnp.float32),
        in_specs=[vmem] * 13,
        out_specs=vmem,
        cost_estimate=pl.CostEstimate(flops=1_000_000, transcendentals=1_200,
                                      bytes_accessed=18_000),
    )(xT, params["w1"], params["b1"], params["w2"], params["b2"],
      params["wp"], params["bp"], params["wc1"], params["bc1"],
      params["wc2"], params["bc2"], params["wl"], params["bl"])

    return jnp.transpose(out_T)                                  # node-major [N, C]


# ------------------------------------ main ------------------------------------------
if __name__ == "__main__":
    key = jax.random.PRNGKey(0)
    k_param, k_x = jax.random.split(key)
    params = init_params(k_param)
    x = jax.random.normal(k_x, (N, F_IN), dtype=jnp.float32)     # data.x
    # edge_index is unused by NLMLP.forward (pure MLP + conv over sorted nodes).

    fwd = jax.jit(lambda xx: nlmlp_forward(params, xx))
    out = fwd(x)
    jax.block_until_ready(out)

    assert out.shape == (N, NUM_CLASSES)
    # log_softmax invariants (computed entirely in-kernel): finite, rows normalized.
    assert bool(jnp.all(jnp.isfinite(out)))
    row_sums = jnp.sum(jnp.exp(out), axis=1)
    assert bool(jnp.max(jnp.abs(row_sums - 1.0)) < 1e-3)
    print("KERNEL_OK")
</pallas_src>

<mosaic_0001>
module attributes {stable_mosaic.version = 11 : i64} {
  func.func @_nlmlp_fused_kernel(%arg0: memref<16x128xf32, #tpu.memory_space<vmem>>, %arg1: memref<32x16xf32, #tpu.memory_space<vmem>>, %arg2: memref<32x1xf32, #tpu.memory_space<vmem>>, %arg3: memref<8x32xf32, #tpu.memory_space<vmem>>, %arg4: memref<8x1xf32, #tpu.memory_space<vmem>>, %arg5: memref<1x8xf32, #tpu.memory_space<vmem>>, %arg6: memref<1x1xf32, #tpu.memory_space<vmem>>, %arg7: memref<8x24xf32, #tpu.memory_space<vmem>>, %arg8: memref<8x1xf32, #tpu.memory_space<vmem>>, %arg9: memref<8x24xf32, #tpu.memory_space<vmem>>, %arg10: memref<8x1xf32, #tpu.memory_space<vmem>>, %arg11: memref<8x16xf32, #tpu.memory_space<vmem>>, %arg12: memref<8x1xf32, #tpu.memory_space<vmem>>, %arg13: memref<8x128xf32, #tpu.memory_space<vmem>>) attributes {dimension_semantics = [], scalar_prefetch = 0 : i64, scratch_operands = 0 : i64, tpu.core_type = #tpu.core_type<tc>} {
    %c0 = arith.constant 0 : index
    %c0_0 = arith.constant 0 : index
    %0 = vector.load %arg1[%c0, %c0_0] : memref<32x16xf32, #tpu.memory_space<vmem>>, vector<32x16xf32>
    %c0_1 = arith.constant 0 : index
    %c0_2 = arith.constant 0 : index
    %1 = vector.load %arg0[%c0_1, %c0_2] : memref<16x128xf32, #tpu.memory_space<vmem>>, vector<16x128xf32>
    %cst = arith.constant dense<0.000000e+00> : vector<32x128xf32>
    %2 = tpu.matmul %0, %1, %cst {dimension_numbers = #tpu.dot_dimension_numbers<[1], [0], [0], [1], [0, 0, 1, 1], [], []>} : vector<32x16xf32>, vector<16x128xf32>, vector<32x128xf32> -> vector<32x128xf32>
    %c0_3 = arith.constant 0 : index
    %c0_4 = arith.constant 0 : index
    %3 = vector.load %arg2[%c0_3, %c0_4] : memref<32x1xf32, #tpu.memory_space<vmem>>, vector<32x1xf32>
    %4 = vector.broadcast %3 : vector<32x1xf32> to vector<32x128xf32>
    %5 = arith.addf %2, %4 : vector<32x128xf32>
    %cst_5 = arith.constant 0.000000e+00 : f32
    %6 = vector.broadcast %cst_5 : f32 to vector<32x128xf32>
    %7 = arith.maximumf %5, %6 : vector<32x128xf32>
    %c0_6 = arith.constant 0 : index
    %c0_7 = arith.constant 0 : index
    %8 = vector.load %arg3[%c0_6, %c0_7] : memref<8x32xf32, #tpu.memory_space<vmem>>, vector<8x32xf32>
    %cst_8 = arith.constant dense<0.000000e+00> : vector<8x128xf32>
    %9 = tpu.matmul %8, %7, %cst_8 {dimension_numbers = #tpu.dot_dimension_numbers<[1], [0], [0], [1], [0, 0, 1, 1], [], []>} : vector<8x32xf32>, vector<32x128xf32>, vector<8x128xf32> -> vector<8x128xf32>
    %c0_9 = arith.constant 0 : index
    %c0_10 = arith.constant 0 : index
    %10 = vector.load %arg4[%c0_9, %c0_10] : memref<8x1xf32, #tpu.memory_space<vmem>>, vector<8x1xf32>
    %11 = vector.broadcast %10 : vector<8x1xf32> to vector<8x128xf32>
    %12 = arith.addf %9, %11 : vector<8x128xf32>
    %c0_11 = arith.constant 0 : index
    %c0_12 = arith.constant 0 : index
    %13 = vector.load %arg5[%c0_11, %c0_12] : memref<1x8xf32, #tpu.memory_space<vmem>>, vector<1x8xf32>
    %cst_13 = arith.constant dense<0.000000e+00> : vector<1x128xf32>
    %14 = tpu.matmul %13, %12, %cst_13 {dimension_numbers = #tpu.dot_dimension_numbers<[1], [0], [0], [1], [0, 0, 1, 1], [], []>} : vector<1x8xf32>, vector<8x128xf32>, vector<1x128xf32> -> vector<1x128xf32>
    %c0_14 = arith.constant 0 : index
    %c0_15 = arith.constant 0 : index
    %15 = vector.load %arg6[%c0_14, %c0_15] : memref<1x1xf32, #tpu.memory_space<vmem>>, vector<1x1xf32>
    %16 = vector.broadcast %15 : vector<1x1xf32> to vector<1x128xf32>
    %17 = arith.addf %14, %16 : vector<1x128xf32>
    %18 = tpu.iota {dimensions = array<i32: 1>} : vector<128x128xi32>
    %19 = tpu.iota {dimensions = array<i32: 0>} : vector<128x128xi32>
    %20 = vector.shape_cast %17 : vector<1x128xf32> to vector<1x128xf32>
    %21 = vector.broadcast %20 : vector<1x128xf32> to vector<128x128xf32>
    %22 = tpu.transpose %21, [1, 0] : vector<128x128xf32> -> vector<128x128xf32>
    %23 = arith.cmpf olt, %21, %22 : vector<128x128xf32>
    %24 = arith.cmpf oeq, %21, %22 : vector<128x128xf32>
    %25 = arith.cmpi slt, %18, %19 : vector<128x128xi32>
    %26 = arith.andi %24, %25 : vector<128x128xi1>
    %27 = arith.ori %23, %26 : vector<128x128xi1>
    %28 = arith.extui %27 : vector<128x128xi1> to vector<128x128xi32>
    %29 = arith.sitofp %28 : vector<128x128xi32> to vector<128x128xf32>
    %cst_16 = arith.constant dense<0.000000e+00> : vector<128xf32>
    %30 = vector.multi_reduction <add>, %29, %cst_16 [1] : vector<128x128xf32> to vector<128xf32>
    %31 = vector.shape_cast %30 : vector<128xf32> to vector<128x1xf32>
    %32 = arith.sitofp %18 : vector<128x128xi32> to vector<128x128xf32>
    %33 = vector.broadcast %31 : vector<128x1xf32> to vector<128x128xf32>
    %34 = arith.cmpf oeq, %33, %32 : vector<128x128xf32>
    %35 = arith.extui %34 : vector<128x128xi1> to vector<128x128xi32>
    %36 = arith.sitofp %35 : vector<128x128xi32> to vector<128x128xf32>
    %37 = vector.broadcast %17 : vector<1x128xf32> to vector<8x128xf32>
    %38 = arith.mulf %12, %37 : vector<8x128xf32>
    %cst_17 = arith.constant dense<0.000000e+00> : vector<8x128xf32>
    %39 = tpu.matmul %38, %36, %cst_17 {dimension_numbers = #tpu.dot_dimension_numbers<[1], [0], [0], [1], [0, 0, 1, 1], [], []>} : vector<8x128xf32>, vector<128x128xf32>, vector<8x128xf32> -> vector<8x128xf32>
    %40 = tpu.iota {dimensions = array<i32: 1>} : vector<1x128xi32>
    %c1_i32 = arith.constant 1 : i32
    %41 = tpu.dynamic_rotate %39 by %c1_i32 dim 1 : vector<8x128xf32>, i32 -> vector<8x128xf32>
    %c-1_i32 = arith.constant -1 : i32
    %42 = vector.broadcast %c-1_i32 : i32 to vector<1x128xi32>
    %43 = arith.addi %40, %42 : vector<1x128xi32>
    %c0_i32 = arith.constant 0 : i32
    %44 = vector.broadcast %c0_i32 : i32 to vector<1x128xi32>
    %45 = arith.cmpi sge, %43, %44 : vector<1x128xi32>
    %c-1_i32_18 = arith.constant -1 : i32
    %46 = vector.broadcast %c-1_i32_18 : i32 to vector<1x128xi32>
    %47 = arith.addi %40, %46 : vector<1x128xi32>
    %c128_i32 = arith.constant 128 : i32
    %48 = vector.broadcast %c128_i32 : i32 to vector<1x128xi32>
    %49 = arith.cmpi slt, %47, %48 : vector<1x128xi32>
    %50 = arith.andi %45, %49 : vector<1x128xi1>
    %cst_19 = arith.constant 0.000000e+00 : f32
    %51 = vector.shape_cast %50 : vector<1x128xi1> to vector<1x128xi1>
    %52 = vector.broadcast %51 : vector<1x128xi1> to vector<8x128xi1>
    %53 = vector.broadcast %cst_19 : f32 to vector<8x128xf32>
    %54 = arith.select %52, %41, %53 : vector<8x128xi1>, vector<8x128xf32>
    %c127_i32 = arith.constant 127 : i32
    %55 = tpu.dynamic_rotate %39 by %c127_i32 dim 1 : vector<8x128xf32>, i32 -> vector<8x128xf32>
    %c1_i32_20 = arith.constant 1 : i32
    %56 = vector.broadcast %c1_i32_20 : i32 to vector<1x128xi32>
    %57 = arith.addi %40, %56 : vector<1x128xi32>
    %c0_i32_21 = arith.constant 0 : i32
    %58 = vector.broadcast %c0_i32_21 : i32 to vector<1x128xi32>
    %59 = arith.cmpi sge, %57, %58 : vector<1x128xi32>
    %c1_i32_22 = arith.constant 1 : i32
    %60 = vector.broadcast %c1_i32_22 : i32 to vector<1x128xi32>
    %61 = arith.addi %40, %60 : vector<1x128xi32>
    %c128_i32_23 = arith.constant 128 : i32
    %62 = vector.broadcast %c128_i32_23 : i32 to vector<1x128xi32>
    %63 = arith.cmpi slt, %61, %62 : vector<1x128xi32>
    %64 = arith.andi %59, %63 : vector<1x128xi1>
    %cst_24 = arith.constant 0.000000e+00 : f32
    %65 = vector.shape_cast %64 : vector<1x128xi1> to vector<1x128xi1>
    %66 = vector.broadcast %65 : vector<1x128xi1> to vector<8x128xi1>
    %67 = vector.broadcast %cst_24 : f32 to vector<8x128xf32>
    %68 = arith.select %66, %55, %67 : vector<8x128xi1>, vector<8x128xf32>
    %69 = tpu.concatenate %54, %39, %68 in 0 : vector<8x128xf32>, vector<8x128xf32>, vector<8x128xf32> -> vector<24x128xf32>
    %c0_25 = arith.constant 0 : index
    %c0_26 = arith.constant 0 : index
    %70 = vector.load %arg7[%c0_25, %c0_26] : memref<8x24xf32, #tpu.memory_space<vmem>>, vector<8x24xf32>
    %cst_27 = arith.constant dense<0.000000e+00> : vector<8x128xf32>
    %71 = tpu.matmul %70, %69, %cst_27 {dimension_numbers = #tpu.dot_dimension_numbers<[1], [0], [0], [1], [0, 0, 1, 1], [], []>} : vector<8x24xf32>, vector<24x128xf32>, vector<8x128xf32> -> vector<8x128xf32>
    %c0_28 = arith.constant 0 : index
    %c0_29 = arith.constant 0 : index
    %72 = vector.load %arg8[%c0_28, %c0_29] : memref<8x1xf32, #tpu.memory_space<vmem>>, vector<8x1xf32>
    %73 = vector.broadcast %72 : vector<8x1xf32> to vector<8x128xf32>
    %74 = arith.addf %71, %73 : vector<8x128xf32>
    %cst_30 = arith.constant 0.000000e+00 : f32
    %75 = vector.broadcast %cst_30 : f32 to vector<8x128xf32>
    %76 = arith.maximumf %74, %75 : vector<8x128xf32>
    %c1_i32_31 = arith.constant 1 : i32
    %77 = tpu.dynamic_rotate %76 by %c1_i32_31 dim 1 : vector<8x128xf32>, i32 -> vector<8x128xf32>
    %c-1_i32_32 = arith.constant -1 : i32
    %78 = vector.broadcast %c-1_i32_32 : i32 to vector<1x128xi32>
    %79 = arith.addi %40, %78 : vector<1x128xi32>
    %c0_i32_33 = arith.constant 0 : i32
    %80 = vector.broadcast %c0_i32_33 : i32 to vector<1x128xi32>
    %81 = arith.cmpi sge, %79, %80 : vector<1x128xi32>
    %c-1_i32_34 = arith.constant -1 : i32
    %82 = vector.broadcast %c-1_i32_34 : i32 to vector<1x128xi32>
    %83 = arith.addi %40, %82 : vector<1x128xi32>
    %c128_i32_35 = arith.constant 128 : i32
    %84 = vector.broadcast %c128_i32_35 : i32 to vector<1x128xi32>
    %85 = arith.cmpi slt, %83, %84 : vector<1x128xi32>
    %86 = arith.andi %81, %85 : vector<1x128xi1>
    %cst_36 = arith.constant 0.000000e+00 : f32
    %87 = vector.shape_cast %86 : vector<1x128xi1> to vector<1x128xi1>
    %88 = vector.broadcast %87 : vector<1x128xi1> to vector<8x128xi1>
    %89 = vector.broadcast %cst_36 : f32 to vector<8x128xf32>
    %90 = arith.select %88, %77, %89 : vector<8x128xi1>, vector<8x128xf32>
    %c127_i32_37 = arith.constant 127 : i32
    %91 = tpu.dynamic_rotate %76 by %c127_i32_37 dim 1 : vector<8x128xf32>, i32 -> vector<8x128xf32>
    %c1_i32_38 = arith.constant 1 : i32
    %92 = vector.broadcast %c1_i32_38 : i32 to vector<1x128xi32>
    %93 = arith.addi %40, %92 : vector<1x128xi32>
    %c0_i32_39 = arith.constant 0 : i32
    %94 = vector.broadcast %c0_i32_39 : i32 to vector<1x128xi32>
    %95 = arith.cmpi sge, %93, %94 : vector<1x128xi32>
    %c1_i32_40 = arith.constant 1 : i32
    %96 = vector.broadcast %c1_i32_40 : i32 to vector<1x128xi32>
    %97 = arith.addi %40, %96 : vector<1x128xi32>
    %c128_i32_41 = arith.constant 128 : i32
    %98 = vector.broadcast %c128_i32_41 : i32 to vector<1x128xi32>
    %99 = arith.cmpi slt, %97, %98 : vector<1x128xi32>
    %100 = arith.andi %95, %99 : vector<1x128xi1>
    %cst_42 = arith.constant 0.000000e+00 : f32
    %101 = vector.shape_cast %100 : vector<1x128xi1> to vector<1x128xi1>
    %102 = vector.broadcast %101 : vector<1x128xi1> to vector<8x128xi1>
    %103 = vector.broadcast %cst_42 : f32 to vector<8x128xf32>
    %104 = arith.select %102, %91, %103 : vector<8x128xi1>, vector<8x128xf32>
    %105 = tpu.concatenate %90, %76, %104 in 0 : vector<8x128xf32>, vector<8x128xf32>, vector<8x128xf32> -> vector<24x128xf32>
    %c0_43 = arith.constant 0 : index
    %c0_44 = arith.constant 0 : index
    %106 = vector.load %arg9[%c0_43, %c0_44] : memref<8x24xf32, #tpu.memory_space<vmem>>, vector<8x24xf32>
    %cst_45 = arith.constant dense<0.000000e+00> : vector<8x128xf32>
    %107 = tpu.matmul %106, %105, %cst_45 {dimension_numbers = #tpu.dot_dimension_numbers<[1], [0], [0], [1], [0, 0, 1, 1], [], []>} : vector<8x24xf32>, vector<24x128xf32>, vector<8x128xf32> -> vector<8x128xf32>
    %c0_46 = arith.constant 0 : index
    %c0_47 = arith.constant 0 : index
    %108 = vector.load %arg10[%c0_46, %c0_47] : memref<8x1xf32, #tpu.memory_space<vmem>>, vector<8x1xf32>
    %109 = vector.broadcast %108 : vector<8x1xf32> to vector<8x128xf32>
    %110 = arith.addf %107, %109 : vector<8x128xf32>
    %cst_48 = arith.constant dense<0.000000e+00> : vector<8x128xf32>
    %111 = tpu.matmul %110, %36, %cst_48 {dimension_numbers = #tpu.dot_dimension_numbers<[1], [1], [0], [0], [0, 0, 1, 0], [], []>} : vector<8x128xf32>, vector<128x128xf32>, vector<8x128xf32> -> vector<8x128xf32>
    %c0_49 = arith.constant 0 : index
    %c0_50 = arith.constant 0 : index
    %112 = vector.load %arg11[%c0_49, %c0_50] : memref<8x16xf32, #tpu.memory_space<vmem>>, vector<8x16xf32>
    %113 = tpu.concatenate %12, %111 in 0 : vector<8x128xf32>, vector<8x128xf32> -> vector<16x128xf32>
    %cst_51 = arith.constant dense<0.000000e+00> : vector<8x128xf32>
    %114 = tpu.matmul %112, %113, %cst_51 {dimension_numbers = #tpu.dot_dimension_numbers<[1], [0], [0], [1], [0, 0, 1, 1], [], []>} : vector<8x16xf32>, vector<16x128xf32>, vector<8x128xf32> -> vector<8x128xf32>
    %c0_52 = arith.constant 0 : index
    %c0_53 = arith.constant 0 : index
    %115 = vector.load %arg12[%c0_52, %c0_53] : memref<8x1xf32, #tpu.memory_space<vmem>>, vector<8x1xf32>
    %116 = vector.broadcast %115 : vector<8x1xf32> to vector<8x128xf32>
    %117 = arith.addf %114, %116 : vector<8x128xf32>
    %cst_54 = arith.constant dense<0xFF800000> : vector<128xf32>
    %118 = vector.multi_reduction <maximumf>, %117, %cst_54 [0] : vector<8x128xf32> to vector<128xf32>
    %119 = vector.shape_cast %118 : vector<128xf32> to vector<1x128xf32>
    %120 = vector.broadcast %119 : vector<1x128xf32> to vector<8x128xf32>
    %121 = arith.subf %117, %120 : vector<8x128xf32>
    %122 = math.exp %121 : vector<8x128xf32>
    %cst_55 = arith.constant dense<0.000000e+00> : vector<128xf32>
    %123 = vector.multi_reduction <add>, %122, %cst_55 [0] : vector<8x128xf32> to vector<128xf32>
    %124 = vector.shape_cast %123 : vector<128xf32> to vector<1x128xf32>
    %125 = vector.broadcast %119 : vector<1x128xf32> to vector<8x128xf32>
    %126 = arith.subf %117, %125 : vector<8x128xf32>
    %127 = math.log %124 : vector<1x128xf32>
    %128 = vector.broadcast %127 : vector<1x128xf32> to vector<8x128xf32>
    %129 = arith.subf %126, %128 : vector<8x128xf32>
    %c0_56 = arith.constant 0 : index
    %c0_57 = arith.constant 0 : index
    %130 = vector.load %arg13[%c0_56, %c0_57] : memref<8x128xf32, #tpu.memory_space<vmem>>, vector<8x128xf32>
    tpu.vector_store %arg13[%c0_56, %c0_57], %129 {strides = array<i32>} : memref<8x128xf32, #tpu.memory_space<vmem>>, vector<8x128xf32>,
    return
  }
}

</mosaic_0001>

<llo_original>
// kernel: _lambda_.1
$region0: #{_lambda_.1}
  #allocation0 [shape = 'u32[]', space=smem, size = 0x4, offset = 0x4, fixed_abs, tag = 'smem constant byte address 0x4 - core index']
  #allocation1 [shape = 'u32[144,128]{1,0:T(1,128)}', space=vmem, size = 0x12000, scoped, tag = 'internal scratch']
  #allocation2 [shape = 'f32[1,1]{1,0:T(1,128)S(1)}', space=vmem, size = 0x200, scoped, tag = 'scoped memory for _lambda_.1']
  %s0 = inlined_call_operand.hbm [shape: f32[16,128], index: 0, kind: input, shape index: {}]
  %s1 = inlined_call_operand.hbm [shape: f32[32,16], index: 1, kind: input, shape index: {}]
  %s2 = inlined_call_operand.hbm [shape: f32[32,1], index: 2, kind: input, shape index: {}]
  %s3 = inlined_call_operand.hbm [shape: f32[8,32], index: 3, kind: input, shape index: {}]
  %s4 = inlined_call_operand.hbm [shape: f32[8,1], index: 4, kind: input, shape index: {}]
  %s5 = inlined_call_operand.vmem [shape: f32[1,8], index: 5, kind: input, shape index: {}]
  %s6 = inlined_call_operand.<no memory space> [shape: f32[1,1], index: 6, kind: input, shape index: {}]
  %s7 = inlined_call_operand.hbm [shape: f32[8,24], index: 7, kind: input, shape index: {}]
  %s8 = inlined_call_operand.hbm [shape: f32[8,1], index: 8, kind: input, shape index: {}]
  %s9 = inlined_call_operand.vmem [shape: f32[8,24], index: 9, kind: input, shape index: {}]
  %s10 = inlined_call_operand.vmem [shape: f32[8,1], index: 10, kind: input, shape index: {}]
  %s11 = inlined_call_operand.vmem [shape: f32[8,16], index: 11, kind: input, shape index: {}]
  %s12 = inlined_call_operand.vmem [shape: f32[8,1], index: 12, kind: input, shape index: {}]
  %s13 = inlined_call_operand.hbm [shape: f32[8,128], index: 13, kind: output, shape index: {}]
  %s14 = sld [smem:[#allocation0]]
  $region90: #{_lambda_.1} parent=0
    _
  %s16 = ssub.s32 1, %s14
  %s17 = scalar_select 0, %s16, %s14
  %v18 = vstv %s6
  %19 = vst [vmem:[#allocation2] sm:$0x1] %v18
  $region1: #{_lambda_.1} parent=0
    #allocation3 [shape = 'u8[8192]{0}', space=vmem, size = 0x2000, scoped, tag = 'input window, operand 0, single buffered']
    #allocation4 [shape = 's32[1]{0}', space=sflag, size = 0x4, scoped, tag = 'scoped memory for _lambda_.1']
    #allocation5 [shape = 's32[1]{0}', space=sflag, size = 0x4, scoped, tag = 'scoped memory for _lambda_.1']
    #allocation6 [shape = 'u8[16384]{0}', space=vmem, size = 0x4000, scoped, tag = 'input window, operand 1, single buffered']
    #allocation7 [shape = 's32[1]{0}', space=sflag, size = 0x4, scoped, tag = 'scoped memory for _lambda_.1']
    #allocation8 [shape = 'u8[16384]{0}', space=vmem, size = 0x4000, scoped, tag = 'input window, operand 2, single buffered']
    #allocation9 [shape = 'u8[4096]{0}', space=vmem, size = 0x1000, scoped, tag = 'input window, operand 3, single buffered']
    #allocation10 [shape = 's32[1]{0}', space=sflag, size = 0x4, scoped, tag = 'scoped memory for _lambda_.1']
    #allocation11 [shape = 'u8[4096]{0}', space=vmem, size = 0x1000, scoped, tag = 'input window, operand 4, single buffered']
    #allocation12 [shape = 'u8[4096]{0}', space=vmem, size = 0x1000, scoped, tag = 'input window, operand 7, single buffered']
    #allocation13 [shape = 's32[1]{0}', space=sflag, size = 0x4, scoped, tag = 'scoped memory for _lambda_.1']
    #allocation14 [shape = 'u8[4096]{0}', space=vmem, size = 0x1000, scoped, tag = 'input window, operand 8, single buffered']
    #allocation15 [shape = 'u8[4096]{0}', space=vmem, size = 0x1000, scoped, tag = 'output window, operand 0, single buffered']
    %20 = vsyncpa [#allocation4], 0
    %21 = vsyncpa [#allocation7], 0
    %22 = vsyncpa [#allocation10], 0
    %23 = vsyncpa [#allocation13], 0
    %24 = vsyncpa [#allocation5], 0
    // Predicated region
    $region2: #{_lambda_.1} parent=1 // pred_check
      _
    $region3: #{_lambda_.1} parent=1 // pred_check_branch
      %26 = sbr.rel (0) target = $region5
    $region4: #{_lambda_.1} parent=1 // pred_region
      %s28 = ssub.s32 256, 256
      %29 = vsyncadd [#allocation4], %s28
      %s30 = sshll.u32 [#allocation3], 4
      %s31 = int_to_ptr.vmem [resolvable:$true] %s30
      %36 = dma.hbm_to_vmem [thread:$0]  %s0, 256, %s31, [#allocation4], 128, 128, 8
    $region5: #{_lambda_.1} parent=1 // pred_fallthru
      _
    // Predicated region
    $region6: #{_lambda_.1} parent=1 // pred_check
      _
    $region7: #{_lambda_.1} parent=1 // pred_check_branch
      %38 = sbr.rel (0) target = $region9
    $region8: #{_lambda_.1} parent=1 // pred_region
      %s40 = ssub.s32 512, 512
      %41 = vsyncadd [#allocation7], %s40
      %s42 = sshll.u32 [#allocation6], 4
      %s43 = int_to_ptr.vmem [resolvable:$true] %s42
      %48 = dma.hbm_to_vmem [thread:$0]  %s1, 512, %s43, [#allocation7], 128, 128, 8
    $region9: #{_lambda_.1} parent=1 // pred_fallthru
      _
    // Predicated region
    $region10: #{_lambda_.1} parent=1 // pred_check
      _
    $region11: #{_lambda_.1} parent=1 // pred_check_branch
      %50 = sbr.rel (0) target = $region13
    $region12: #{_lambda_.1} parent=1 // pred_region
      %s52 = ssub.s32 512, 512
      %53 = vsyncadd [#allocation7], %s52
      %s54 = sshll.u32 [#allocation8], 4
      %s55 = int_to_ptr.vmem [resolvable:$true] %s54
      %60 = dma.hbm_to_vmem [thread:$0]  %s2, 512, %s55, [#allocation7], 128, 128, 8
    $region13: #{_lambda_.1} parent=1 // pred_fallthru
      _
    // Predicated region
    $region14: #{_lambda_.1} parent=1 // pred_check
      _
    $region15: #{_lambda_.1} parent=1 // pred_check_branch
      %62 = sbr.rel (0) target = $region17
    $region16: #{_lambda_.1} parent=1 // pred_region
      %s64 = ssub.s32 128, 128
      %65 = vsyncadd [#allocation10], %s64
      %s67 = sshll.u32 [#allocation9], 4
      %s68 = int_to_ptr.vmem [resolvable:$true] %s67
      %70 = dma.hbm_to_vmem [thread:$0]  %s3, 128, %s68, [#allocation10]
    $region17: #{_lambda_.1} parent=1 // pred_fallthru
      _
    // Predicated region
    $region18: #{_lambda_.1} parent=1 // pred_check
      _
    $region19: #{_lambda_.1} parent=1 // pred_check_branch
      %72 = sbr.rel (0) target = $region21
    $region20: #{_lambda_.1} parent=1 // pred_region
      %s74 = ssub.s32 128, 128
      %75 = vsyncadd [#allocation10], %s74
      %s77 = sshll.u32 [#allocation11], 4
      %s78 = int_to_ptr.vmem [resolvable:$true] %s77
      %80 = dma.hbm_to_vmem [thread:$0]  %s4, 128, %s78, [#allocation10]
    $region21: #{_lambda_.1} parent=1 // pred_fallthru
      _
    // Predicated region
    $region22: #{_lambda_.1} parent=1 // pred_check
      _
    $region23: #{_lambda_.1} parent=1 // pred_check_branch
      %82 = sbr.rel (0) target = $region25
    $region24: #{_lambda_.1} parent=1 // pred_region
      _
    $region25: #{_lambda_.1} parent=1 // pred_fallthru
      _
    // Predicated region
    $region26: #{_lambda_.1} parent=1 // pred_check
      _
    $region27: #{_lambda_.1} parent=1 // pred_check_branch
      %84 = sbr.rel (0) target = $region29
    $region28: #{_lambda_.1} parent=1 // pred_region
      _
    $region29: #{_lambda_.1} parent=1 // pred_fallthru
      _
    // Predicated region
    $region30: #{_lambda_.1} parent=1 // pred_check
      _
    $region31: #{_lambda_.1} parent=1 // pred_check_branch
      %86 = sbr.rel (0) target = $region33
    $region32: #{_lambda_.1} parent=1 // pred_region
      %s88 = ssub.s32 128, 128
      %89 = vsyncadd [#allocation13], %s88
      %s91 = sshll.u32 [#allocation12], 4
      %s92 = int_to_ptr.vmem [resolvable:$true] %s91
      %94 = dma.hbm_to_vmem [thread:$0]  %s7, 128, %s92, [#allocation13]
    $region33: #{_lambda_.1} parent=1 // pred_fallthru
      _
    // Predicated region
    $region34: #{_lambda_.1} parent=1 // pred_check
      _
    $region35: #{_lambda_.1} parent=1 // pred_check_branch
      %96 = sbr.rel (0) target = $region37
    $region36: #{_lambda_.1} parent=1 // pred_region
      %s98 = ssub.s32 128, 128
      %99 = vsyncadd [#allocation13], %s98
      %s101 = sshll.u32 [#allocation14], 4
      %s102 = int_to_ptr.vmem [resolvable:$true] %s101
      %104 = dma.hbm_to_vmem [thread:$0]  %s8, 128, %s102, [#allocation13]
    $region37: #{_lambda_.1} parent=1 // pred_fallthru
      _
    // Predicated region
    $region38: #{_lambda_.1} parent=1 // pred_check
      _
    $region39: #{_lambda_.1} parent=1 // pred_check_branch
      %106 = sbr.rel (0) target = $region41
    $region40: #{_lambda_.1} parent=1 // pred_region
      _
    $region41: #{_lambda_.1} parent=1 // pred_fallthru
      _
    // Predicated region
    $region42: #{_lambda_.1} parent=1 // pred_check
      _
    $region43: #{_lambda_.1} parent=1 // pred_check_branch
      %108 = sbr.rel (0) target = $region45
    $region44: #{_lambda_.1} parent=1 // pred_region
      _
    $region45: #{_lambda_.1} parent=1 // pred_fallthru
      _
    // Predicated region
    $region46: #{_lambda_.1} parent=1 // pred_check
      _
    $region47: #{_lambda_.1} parent=1 // pred_check_branch
      %110 = sbr.rel (0) target = $region49
    $region48: #{_lambda_.1} parent=1 // pred_region
      _
    $region49: #{_lambda_.1} parent=1 // pred_fallthru
      _
    // Predicated region
    $region50: #{_lambda_.1} parent=1 // pred_check
      _
    $region51: #{_lambda_.1} parent=1 // pred_check_branch
      %112 = sbr.rel (0) target = $region53
    $region52: #{_lambda_.1} parent=1 // pred_region
      _
    $region53: #{_lambda_.1} parent=1 // pred_fallthru
      _
    // Predicated region
    $region54: #{_lambda_.1} parent=1 // pred_check
      _
    $region55: #{_lambda_.1} parent=1 // pred_check_branch
      %114 = sbr.rel (0) target = $region57
    $region56: #{_lambda_.1} parent=1 // pred_region
      %115 = dma.done [#allocation4], 256
    $region57: #{_lambda_.1} parent=1 // pred_fallthru
      _
    // Predicated region
    $region58: #{_lambda_.1} parent=1 // pred_check
      _
    $region59: #{_lambda_.1} parent=1 // pred_check_branch
      %117 = sbr.rel (0) target = $region61
    $region60: #{_lambda_.1} parent=1 // pred_region
      %118 = dma.done [#allocation7], 512
    $region61: #{_lambda_.1} parent=1 // pred_fallthru
      _
    // Predicated region
    $region62: #{_lambda_.1} parent=1 // pred_check
      _
    $region63: #{_lambda_.1} parent=1 // pred_check_branch
      %120 = sbr.rel (0) target = $region65
    $region64: #{_lambda_.1} parent=1 // pred_region
      %121 = dma.done [#allocation7], 512
    $region65: #{_lambda_.1} parent=1 // pred_fallthru
      _
    // Predicated region
    $region66: #{_lambda_.1} parent=1 // pred_check
      _
    $region67: #{_lambda_.1} parent=1 // pred_check_branch
      %123 = sbr.rel (0) target = $region69
    $region68: #{_lambda_.1} parent=1 // pred_region
      %124 = dma.done [#allocation10], 128
    $region69: #{_lambda_.1} parent=1 // pred_fallthru
      _
    // Predicated region
    $region70: #{_lambda_.1} parent=1 // pred_check
      _
    $region71: #{_lambda_.1} parent=1 // pred_check_branch
      %126 = sbr.rel (0) target = $region73
    $region72: #{_lambda_.1} parent=1 // pred_region
      %127 = dma.done [#allocation10], 128
    $region73: #{_lambda_.1} parent=1 // pred_fallthru
      _
    // Predicated region
    $region74: #{_lambda_.1} parent=1 // pred_check
      _
    $region75: #{_lambda_.1} parent=1 // pred_check_branch
      %129 = sbr.rel (0) target = $region77
    $region76: #{_lambda_.1} parent=1 // pred_region
      %130 = dma.done [#allocation13], 128
    $region77: #{_lambda_.1} parent=1 // pred_fallthru
      _
    // Predicated region
    $region78: #{_lambda_.1} parent=1 // pred_check
      _
    $region79: #{_lambda_.1} parent=1 // pred_check_branch
      %132 = sbr.rel (0) target = $region81
    $region80: #{_lambda_.1} parent=1 // pred_region
      %133 = dma.done [#allocation13], 128
    $region81: #{_lambda_.1} parent=1 // pred_fallthru
      _
    %v134 = vld [vmem:[#allocation6] sm:$0xff]
    %v135 = vld [vmem:[#allocation6 + $0x8] sm:$0xff]
    %v136 = vld [vmem:[#allocation6 + $0x10] sm:$0xff]
    %v137 = vld [vmem:[#allocation6 + $0x18] sm:$0xff]
    %v138 = vld [vmem:[#allocation3] sm:$0xff]
    %v139 = vld [vmem:[#allocation3 + $0x8] sm:$0xff]
    %v140 = vld [vmem:[#allocation8] sm:$0xff]
    %v141 = vld [vmem:[#allocation8 + $0x8] sm:$0xff]
    %v142 = vld [vmem:[#allocation8 + $0x10] sm:$0xff]
    %v143 = vld [vmem:[#allocation8 + $0x18] sm:$0xff]
    %145 = vset.pattern.permute.xlu0 0
    %146 = vperm.xlu0 %145, %v140
    %v147 = vpop.permute.xlu0 %146
    %150 = vset.pattern.permute.xlu0 0
    %151 = vperm.xlu0 %150, %v141
    %v152 = vpop.permute.xlu0 %151
    %155 = vset.pattern.permute.xlu0 0
    %156 = vperm.xlu0 %155, %v142
    %v157 = vpop.permute.xlu0 %156
    %160 = vset.pattern.permute.xlu0 0
    %161 = vperm.xlu0 %160, %v143
    %v162 = vpop.permute.xlu0 %161
    %vm164 = vcmask 130048
    %v166 = vsel %vm164, %v134, 0
    %v169 = vsel %vm164, %v135, 0
    %v172 = vsel %vm164, %v136, 0
    %v175 = vsel %vm164, %v137, 0
    %177 = vmatprep.subr.mxu0 0.0
    %178 = vmatpush1.msra.mxu0 %v138
    %179 = vmatprep.subr.mxu0 0.0
    %180 = vmatpush1.msra.mxu0 %v139
    %181 = vmatprep.subr.mxu0 0.0
    %182 = vmatpush1.msra.mxu0 0.0
    %183 = vmatprep.subr.mxu0 0.0
    %184 = vmatpush1.msra.mxu0 0.0
    %185 = vmatprep.subr.mxu0 0.0
    %186 = vmatpush1.msra.mxu0 0.0
    %187 = vmatprep.subr.mxu0 0.0
    %188 = vmatpush1.msra.mxu0 0.0
    %189 = vmatprep.subr.mxu0 0.0
    %190 = vmatpush1.msra.mxu0 0.0
    %191 = vmatprep.subr.mxu0 0.0
    %192 = vmatpush1.msra.mxu0 0.0
    %193 = vmatprep.subr.mxu0 0.0
    %194 = vmatpush1.msra.mxu0 0.0
    %195 = vmatprep.subr.mxu0 0.0
    %196 = vmatpush1.msra.mxu0 0.0
    %197 = vmatprep.subr.mxu0 0.0
    %198 = vmatpush1.msra.mxu0 0.0
    %199 = vmatprep.subr.mxu0 0.0
    %200 = vmatpush1.msra.mxu0 0.0
    %201 = vmatprep.subr.mxu0 0.0
    %202 = vmatpush1.msra.mxu0 0.0
    %203 = vmatprep.subr.mxu0 0.0
    %204 = vmatpush1.msra.mxu0 0.0
    %205 = vmatprep.subr.mxu0 0.0
    %206 = vmatpush1.msra.mxu0 0.0
    %207 = vmatprep.subr.mxu0 0.0
    %208 = vmatpush1.msra.mxu0 0.0
    %209 = vmatprep.subr.mxu0 0.0
    %210 = vmatpush1.msra.mxu0 0.0
    %211 = vmatprep.subr.mxu0 0.0
    %212 = vmatpush1.msra.mxu0 0.0
    %213 = vmatprep.subr.mxu0 0.0
    %214 = vmatpush1.msra.mxu0 0.0
    %215 = vmatprep.subr.mxu0 0.0
    %216 = vmatpush1.msra.mxu0 0.0
    %217 = vmatprep.subr.mxu0 0.0
    %218 = vmatpush1.msra.mxu0 0.0
    %219 = vmatprep.subr.mxu0 0.0
    %220 = vmatpush1.msra.mxu0 0.0
    %221 = vmatprep.subr.mxu0 0.0
    %222 = vmatpush1.msra.mxu0 0.0
    %223 = vmatprep.subr.mxu0 0.0
    %224 = vmatpush1.msra.mxu0 0.0
    %225 = vmatprep.subr.mxu0 0.0
    %226 = vmatpush1.msra.mxu0 0.0
    %227 = vmatprep.subr.mxu0 0.0
    %228 = vmatpush1.msra.mxu0 0.0
    %229 = vmatprep.subr.mxu0 0.0
    %230 = vmatpush1.msra.mxu0 0.0
    %231 = vmatprep.subr.mxu0 0.0
    %232 = vmatpush1.msra.mxu0 0.0
    %233 = vmatprep.subr.mxu0 0.0
    %234 = vmatpush1.msra.mxu0 0.0
    %235 = vmatprep.subr.mxu0 0.0
    %236 = vmatpush1.msra.mxu0 0.0
    %237 = vmatprep.subr.mxu0 0.0
    %238 = vmatpush1.msra.mxu0 0.0
    %239 = vmatprep.subr.mxu0 0.0
    %240 = vmatpush1.msra.mxu0 0.0
    %241 = vmatprep.mubr.f32.mxu0 0.0
    %242 = vmatmul.mubr.f32.gmra.mrb[0].mxu0 %v166
    %v243 = vpop.f32.mrb[0].mxu0
    %v244 = vadd.f32 %v147, %v243
    %v245 = vpop.f32.mrb[0].mxu0
    %246 = vmatprep.mubr.f32.mxu0 0.0
    %247 = vmatmul.mubr.f32.gmra.mrb[0].mxu0 %v169
    %v248 = vpop.f32.mrb[0].mxu0
    %v249 = vadd.f32 %v152, %v248
    %v250 = vpop.f32.mrb[0].mxu0
    %251 = vmatprep.mubr.f32.mxu0 0.0
    %252 = vmatmul.mubr.f32.gmra.mrb[0].mxu0 %v172
    %v253 = vpop.f32.mrb[0].mxu0
    %v254 = vadd.f32 %v157, %v253
    %v255 = vpop.f32.mrb[0].mxu0
    %256 = vmatprep.mubr.f32.mxu0 0.0
    %257 = vmatmul.mubr.f32.gmra.mrb[0].mxu0 %v175
    %v258 = vpop.f32.mrb[0].mxu0
    %v259 = vadd.f32 %v162, %v258
    %v260 = vpop.f32.mrb[0].mxu0
    %261 = vdwg.mxu0
    %v262 = vmax.f32 %v244, 0.0
    %v263 = vmax.f32 %v249, 0.0
    %v264 = vmax.f32 %v254, 0.0
    %v265 = vmax.f32 %v259, 0.0
    %v266 = vld [vmem:[#allocation9] sm:$0xff]
    %v267 = vld [vmem:[#allocation11] sm:$0xff]
    %269 = vset.pattern.permute.xlu0 0
    %270 = vperm.xlu0 %269, %v267
    %v271 = vpop.permute.xlu0 %270
    %vm273 = vcmask 261120
    %v275 = vsel %vm273, %v266, 0
    %277 = vmatprep.subr.mxu0 0.0
    %278 = vmatpush1.msra.mxu0 %v262
    %279 = vmatprep.subr.mxu0 0.0
    %280 = vmatpush1.msra.mxu0 %v263
    %281 = vmatprep.subr.mxu0 0.0
    %282 = vmatpush1.msra.mxu0 %v264
    %283 = vmatprep.subr.mxu0 0.0
    %284 = vmatpush1.msra.mxu0 %v265
    %285 = vmatprep.subr.mxu0 0.0
    %286 = vmatpush1.msra.mxu0 0.0
    %287 = vmatprep.subr.mxu0 0.0
    %288 = vmatpush1.msra.mxu0 0.0
    %289 = vmatprep.subr.mxu0 0.0
    %290 = vmatpush1.msra.mxu0 0.0
    %291 = vmatprep.subr.mxu0 0.0
    %292 = vmatpush1.msra.mxu0 0.0
    %293 = vmatprep.subr.mxu0 0.0
    %294 = vmatpush1.msra.mxu0 0.0
    %295 = vmatprep.subr.mxu0 0.0
    %296 = vmatpush1.msra.mxu0 0.0
    %297 = vmatprep.subr.mxu0 0.0
    %298 = vmatpush1.msra.mxu0 0.0
    %299 = vmatprep.subr.mxu0 0.0
    %300 = vmatpush1.msra.mxu0 0.0
    %301 = vmatprep.subr.mxu0 0.0
    %302 = vmatpush1.msra.mxu0 0.0
    %303 = vmatprep.subr.mxu0 0.0
    %304 = vmatpush1.msra.mxu0 0.0
    %305 = vmatprep.subr.mxu0 0.0
    %306 = vmatpush1.msra.mxu0 0.0
    %307 = vmatprep.subr.mxu0 0.0
    %308 = vmatpush1.msra.mxu0 0.0
    %309 = vmatprep.subr.mxu0 0.0
    %310 = vmatpush1.msra.mxu0 0.0
    %311 = vmatprep.subr.mxu0 0.0
    %312 = vmatpush1.msra.mxu0 0.0
    %313 = vmatprep.subr.mxu0 0.0
    %314 = vmatpush1.msra.mxu0 0.0
    %315 = vmatprep.subr.mxu0 0.0
    %316 = vmatpush1.msra.mxu0 0.0
    %317 = vmatprep.subr.mxu0 0.0
    %318 = vmatpush1.msra.mxu0 0.0
    %319 = vmatprep.subr.mxu0 0.0
    %320 = vmatpush1.msra.mxu0 0.0
    %321 = vmatprep.subr.mxu0 0.0
    %322 = vmatpush1.msra.mxu0 0.0
    %323 = vmatprep.subr.mxu0 0.0
    %324 = vmatpush1.msra.mxu0 0.0
    %325 = vmatprep.subr.mxu0 0.0
    %326 = vmatpush1.msra.mxu0 0.0
    %327 = vmatprep.subr.mxu0 0.0
    %328 = vmatpush1.msra.mxu0 0.0
    %329 = vmatprep.subr.mxu0 0.0
    %330 = vmatpush1.msra.mxu0 0.0
    %331 = vmatprep.subr.mxu0 0.0
    %332 = vmatpush1.msra.mxu0 0.0
    %333 = vmatprep.subr.mxu0 0.0
    %334 = vmatpush1.msra.mxu0 0.0
    %335 = vmatprep.subr.mxu0 0.0
    %336 = vmatpush1.msra.mxu0 0.0
    %337 = vmatprep.subr.mxu0 0.0
    %338 = vmatpush1.msra.mxu0 0.0
    %339 = vmatprep.subr.mxu0 0.0
    %340 = vmatpush1.msra.mxu0 0.0
    %341 = vmatprep.mubr.f32.mxu0 0.0
    %342 = vmatmul.mubr.f32.gmra.mrb[0].mxu0 %v275
    %v343 = vpop.f32.mrb[0].mxu0
    %v344 = vadd.f32 %v271, %v343
    %v345 = vpop.f32.mrb[0].mxu0
    %346 = vdwg.mxu0
    %v347 = vld [vmem:[%s5] sm:$0x1]
    %v348 = vld [vmem:[#allocation2] sm:$0x1]
    %350 = vset.pattern.permute.xlu0 0
    %351 = vperm.xlu0 %350, %v348
    %v352 = vpop.permute.xlu0 %351
    %v354 = vlaneseq
    %v355 = vshrl.u32 %v354, 7
    %v356 = vsub.s32 0, %v355
    %v357 = vrot.slane %v352, %v356
    %vm358 = vcmask 64512
    %v360 = vsel %vm358, %v347, 0
    %362 = vmatprep.subr.mxu0 0.0
    %363 = vmatpush1.msra.mxu0 %v344
    %364 = vmatprep.subr.mxu0 0.0
    %365 = vmatpush1.msra.mxu0 0.0
    %366 = vmatprep.subr.mxu0 0.0
    %367 = vmatpush1.msra.mxu0 0.0
    %368 = vmatprep.subr.mxu0 0.0
    %369 = vmatpush1.msra.mxu0 0.0
    %370 = vmatprep.subr.mxu0 0.0
    %371 = vmatpush1.msra.mxu0 0.0
    %372 = vmatprep.subr.mxu0 0.0
    %373 = vmatpush1.msra.mxu0 0.0
    %374 = vmatprep.subr.mxu0 0.0
    %375 = vmatpush1.msra.mxu0 0.0
    %376 = vmatprep.subr.mxu0 0.0
    %377 = vmatpush1.msra.mxu0 0.0
    %378 = vmatprep.subr.mxu0 0.0
    %379 = vmatpush1.msra.mxu0 0.0
    %380 = vmatprep.subr.mxu0 0.0
    %381 = vmatpush1.msra.mxu0 0.0
    %382 = vmatprep.subr.mxu0 0.0
    %383 = vmatpush1.msra.mxu0 0.0
    %384 = vmatprep.subr.mxu0 0.0
    %385 = vmatpush1.msra.mxu0 0.0
    %386 = vmatprep.subr.mxu0 0.0
    %387 = vmatpush1.msra.mxu0 0.0
    %388 = vmatprep.subr.mxu0 0.0
    %389 = vmatpush1.msra.mxu0 0.0
    %390 = vmatprep.subr.mxu0 0.0
    %391 = vmatpush1.msra.mxu0 0.0
    %392 = vmatprep.subr.mxu0 0.0
    %393 = vmatpush1.msra.mxu0 0.0
    %394 = vmatprep.subr.mxu0 0.0
    %395 = vmatpush1.msra.mxu0 0.0
    %396 = vmatprep.subr.mxu0 0.0
    %397 = vmatpush1.msra.mxu0 0.0
    %398 = vmatprep.subr.mxu0 0.0
    %399 = vmatpush1.msra.mxu0 0.0
    %400 = vmatprep.subr.mxu0 0.0
    %401 = vmatpush1.msra.mxu0 0.0
    %402 = vmatprep.subr.mxu0 0.0
    %403 = vmatpush1.msra.mxu0 0.0
    %404 = vmatprep.subr.mxu0 0.0
    %405 = vmatpush1.msra.mxu0 0.0
    %406 = vmatprep.subr.mxu0 0.0
    %407 = vmatpush1.msra.mxu0 0.0
    %408 = vmatprep.subr.mxu0 0.0
    %409 = vmatpush1.msra.mxu0 0.0
    %410 = vmatprep.subr.mxu0 0.0
    %411 = vmatpush1.msra.mxu0 0.0
    %412 = vmatprep.subr.mxu0 0.0
    %413 = vmatpush1.msra.mxu0 0.0
    %414 = vmatprep.subr.mxu0 0.0
    %415 = vmatpush1.msra.mxu0 0.0
    %416 = vmatprep.subr.mxu0 0.0
    %417 = vmatpush1.msra.mxu0 0.0
    %418 = vmatprep.subr.mxu0 0.0
    %419 = vmatpush1.msra.mxu0 0.0
    %420 = vmatprep.subr.mxu0 0.0
    %421 = vmatpush1.msra.mxu0 0.0
    %422 = vmatprep.subr.mxu0 0.0
    %423 = vmatpush1.msra.mxu0 0.0
    %424 = vmatprep.subr.mxu0 0.0
    %425 = vmatpush1.msra.mxu0 0.0
    %426 = vmatprep.mubr.f32.mxu0 0.0
    %427 = vmatmul.mubr.f32.gmra.mrb[0].mxu0 %v360
    %v428 = vpop.f32.mrb[0].mxu0
    %v429 = vadd.f32 %v357, %v428
    %v430 = vpop.f32.mrb[0].mxu0
    %431 = vdwg.mxu0
    %v432 = vlaneseq
    %v433 = vand.u32 %v432, 127
    %v434 = vlaneseq
    %v435 = vshrl.u32 %v434, 7
    %v436 = vadd.s32 %v435, 8
    %v437 = vadd.s32 %v435, 16
    %v438 = vadd.s32 %v435, 24
    %v439 = vadd.s32 %v435, 32
    %v440 = vadd.s32 %v435, 40
    %v441 = vadd.s32 %v435, 48
    %v442 = vadd.s32 %v435, 56
    %v443 = vadd.s32 %v435, 64
    %v444 = vadd.s32 %v435, 72
    %v445 = vadd.s32 %v435, 80
    %v446 = vadd.s32 %v435, 88
    %v447 = vadd.s32 %v435, 96
    %v448 = vadd.s32 %v435, 104
    %v449 = vadd.s32 %v435, 112
    %v450 = vadd.s32 %v435, 120
    %v451 = vlaneseq
    %v452 = vshrl.u32 %v451, 7
    %v453 = vsub.s32 0, %v452
    %v454 = vrot.slane %v429, %v453
    %455 = vxpose.xlu0.b32.start [1/16] %v454, 128
    %456 = vxpose.xlu0.b32.cont [2/16] %v454, 128
    %457 = vxpose.xlu0.b32.cont [3/16] %v454, 128
    %458 = vxpose.xlu0.b32.cont [4/16] %v454, 128
    %459 = vxpose.xlu0.b32.cont [5/16] %v454, 128
    %460 = vxpose.xlu0.b32.cont [6/16] %v454, 128
    %461 = vxpose.xlu0.b32.cont [7/16] %v454, 128
    %462 = vxpose.xlu0.b32.cont [8/16] %v454, 128
    %463 = vxpose.xlu0.b32.cont [9/16] %v454, 128
    %464 = vxpose.xlu0.b32.cont [10/16] %v454, 128
    %465 = vxpose.xlu0.b32.cont [11/16] %v454, 128
    %466 = vxpose.xlu0.b32.cont [12/16] %v454, 128
    %467 = vxpose.xlu0.b32.cont [13/16] %v454, 128
    %468 = vxpose.xlu0.b32.cont [14/16] %v454, 128
    %469 = vxpose.xlu0.b32.cont [15/16] %v454, 128
    %470 = vxpose.xlu0.b32.end [16/16] %v454, 128
    %v471 = vpop.trf.xlu0
    %v472 = vpop.trf.xlu0
    %v473 = vpop.trf.xlu0
    %v474 = vpop.trf.xlu0
    %v475 = vpop.trf.xlu0
    %v476 = vpop.trf.xlu0
    %v477 = vpop.trf.xlu0
    %v478 = vpop.trf.xlu0
    %v479 = vpop.trf.xlu0
    %v480 = vpop.trf.xlu0
    %v481 = vpop.trf.xlu0
    %v482 = vpop.trf.xlu0
    %v483 = vpop.trf.xlu0
    %v484 = vpop.trf.xlu0
    %v485 = vpop.trf.xlu0
    %v486 = vpop.trf.xlu0
    %vm487 = vcmp.lt.f32.partialorder %v454, %v471
    %vm488 = vcmp.lt.f32.partialorder %v454, %v472
    %vm489 = vcmp.lt.f32.partialorder %v454, %v473
    %vm490 = vcmp.lt.f32.partialorder %v454, %v474
    %vm491 = vcmp.lt.f32.partialorder %v454, %v475
    %vm492 = vcmp.lt.f32.partialorder %v454, %v476
    %vm493 = vcmp.lt.f32.partialorder %v454, %v477
    %vm494 = vcmp.lt.f32.partialorder %v454, %v478
    %vm495 = vcmp.lt.f32.partialorder %v454, %v479
    %vm496 = vcmp.lt.f32.partialorder %v454, %v480
    %vm497 = vcmp.lt.f32.partialorder %v454, %v481
    %vm498 = vcmp.lt.f32.partialorder %v454, %v482
    %vm499 = vcmp.lt.f32.partialorder %v454, %v483
    %vm500 = vcmp.lt.f32.partialorder %v454, %v484
    %vm501 = vcmp.lt.f32.partialorder %v454, %v485
    %vm502 = vcmp.lt.f32.partialorder %v454, %v486
    %vm503 = vcmp.eq.f32.partialorder %v454, %v471
    %vm504 = vcmp.eq.f32.partialorder %v454, %v472
    %vm505 = vcmp.eq.f32.partialorder %v454, %v473
    %vm506 = vcmp.eq.f32.partialorder %v454, %v474
    %vm507 = vcmp.eq.f32.partialorder %v454, %v475
    %vm508 = vcmp.eq.f32.partialorder %v454, %v476
    %vm509 = vcmp.eq.f32.partialorder %v454, %v477
    %vm510 = vcmp.eq.f32.partialorder %v454, %v478
    %vm511 = vcmp.eq.f32.partialorder %v454, %v479
    %vm512 = vcmp.eq.f32.partialorder %v454, %v480
    %vm513 = vcmp.eq.f32.partialorder %v454, %v481
    %vm514 = vcmp.eq.f32.partialorder %v454, %v482
    %vm515 = vcmp.eq.f32.partialorder %v454, %v483
    %vm516 = vcmp.eq.f32.partialorder %v454, %v484
    %vm517 = vcmp.eq.f32.partialorder %v454, %v485
    %vm518 = vcmp.eq.f32.partialorder %v454, %v486
    %vm519 = vcmp.lt.s32.totalorder %v433, %v435
    %vm520 = vcmp.lt.s32.totalorder %v433, %v436
    %vm521 = vcmp.lt.s32.totalorder %v433, %v437
    %vm522 = vcmp.lt.s32.totalorder %v433, %v438
    %vm523 = vcmp.lt.s32.totalorder %v433, %v439
    %vm524 = vcmp.lt.s32.totalorder %v433, %v440
    %vm525 = vcmp.lt.s32.totalorder %v433, %v441
    %vm526 = vcmp.lt.s32.totalorder %v433, %v442
    %vm527 = vcmp.lt.s32.totalorder %v433, %v443
    %vm528 = vcmp.lt.s32.totalorder %v433, %v444
    %vm529 = vcmp.lt.s32.totalorder %v433, %v445
    %vm530 = vcmp.lt.s32.totalorder %v433, %v446
    %vm531 = vcmp.lt.s32.totalorder %v433, %v447
    %vm532 = vcmp.lt.s32.totalorder %v433, %v448
    %vm533 = vcmp.lt.s32.totalorder %v433, %v449
    %vm534 = vcmp.lt.s32.totalorder %v433, %v450
    %vm535 = vmand %vm503, %vm519
    %vm536 = vmand %vm504, %vm520
    %vm537 = vmand %vm505, %vm521
    %vm538 = vmand %vm506, %vm522
    %vm539 = vmand %vm507, %vm523
    %vm540 = vmand %vm508, %vm524
    %vm541 = vmand %vm509, %vm525
    %vm542 = vmand %vm510, %vm526
    %vm543 = vmand %vm511, %vm527
    %vm544 = vmand %vm512, %vm528
    %vm545 = vmand %vm513, %vm529
    %vm546 = vmand %vm514, %vm530
    %vm547 = vmand %vm515, %vm531
    %vm548 = vmand %vm516, %vm532
    %vm549 = vmand %vm517, %vm533
    %vm550 = vmand %vm518, %vm534
    %vm551 = vmor %vm487, %vm535
    %vm552 = vmor %vm488, %vm536
    %vm553 = vmor %vm489, %vm537
    %vm554 = vmor %vm490, %vm538
    %vm555 = vmor %vm491, %vm539
    %vm556 = vmor %vm492, %vm540
    %vm557 = vmor %vm493, %vm541
    %vm558 = vmor %vm494, %vm542
    %vm559 = vmor %vm495, %vm543
    %vm560 = vmor %vm496, %vm544
    %vm561 = vmor %vm497, %vm545
    %vm562 = vmor %vm498, %vm546
    %vm563 = vmor %vm499, %vm547
    %vm564 = vmor %vm500, %vm548
    %vm565 = vmor %vm501, %vm549
    %vm566 = vmor %vm502, %vm550
    %v567 = vsel %vm551, 1, 0
    %v568 = vsel %vm552, 1, 0
    %v569 = vsel %vm553, 1, 0
    %v570 = vsel %vm554, 1, 0
    %v571 = vsel %vm555, 1, 0
    %v572 = vsel %vm556, 1, 0
    %v573 = vsel %vm557, 1, 0
    %v574 = vsel %vm558, 1, 0
    %v575 = vsel %vm559, 1, 0
    %v576 = vsel %vm560, 1, 0
    %v577 = vsel %vm561, 1, 0
    %v578 = vsel %vm562, 1, 0
    %v579 = vsel %vm563, 1, 0
    %v580 = vsel %vm564, 1, 0
    %v581 = vsel %vm565, 1, 0
    %v582 = vsel %vm566, 1, 0
    %v583 = vcvt.s32.f32 %v567
    %v584 = vcvt.s32.f32 %v568
    %v585 = vcvt.s32.f32 %v569
    %v586 = vcvt.s32.f32 %v570
    %v587 = vcvt.s32.f32 %v571
    %v588 = vcvt.s32.f32 %v572
    %v589 = vcvt.s32.f32 %v573
    %v590 = vcvt.s32.f32 %v574
    %v591 = vcvt.s32.f32 %v575
    %v592 = vcvt.s32.f32 %v576
    %v593 = vcvt.s32.f32 %v577
    %v594 = vcvt.s32.f32 %v578
    %v595 = vcvt.s32.f32 %v579
    %v596 = vcvt.s32.f32 %v580
    %v597 = vcvt.s32.f32 %v581
    %v598 = vcvt.s32.f32 %v582
    %599 = vadd.xlane.f32.xlu0 %v583
    %v600 = vpop.xlane.xlu0 %599
    %601 = vadd.xlane.f32.xlu0 %v584
    %v602 = vpop.xlane.xlu0 %601
    %603 = vadd.xlane.f32.xlu0 %v585
    %v604 = vpop.xlane.xlu0 %603
    %605 = vadd.xlane.f32.xlu0 %v586
    %v606 = vpop.xlane.xlu0 %605
    %607 = vadd.xlane.f32.xlu0 %v587
    %v608 = vpop.xlane.xlu0 %607
    %609 = vadd.xlane.f32.xlu0 %v588
    %v610 = vpop.xlane.xlu0 %609
    %611 = vadd.xlane.f32.xlu0 %v589
    %v612 = vpop.xlane.xlu0 %611
    %613 = vadd.xlane.f32.xlu0 %v590
    %v614 = vpop.xlane.xlu0 %613
    %615 = vadd.xlane.f32.xlu0 %v591
    %v616 = vpop.xlane.xlu0 %615
    %617 = vadd.xlane.f32.xlu0 %v592
    %v618 = vpop.xlane.xlu0 %617
    %619 = vadd.xlane.f32.xlu0 %v593
    %v620 = vpop.xlane.xlu0 %619
    %621 = vadd.xlane.f32.xlu0 %v594
    %v622 = vpop.xlane.xlu0 %621
    %623 = vadd.xlane.f32.xlu0 %v595
    %v624 = vpop.xlane.xlu0 %623
    %625 = vadd.xlane.f32.xlu0 %v596
    %v626 = vpop.xlane.xlu0 %625
    %627 = vadd.xlane.f32.xlu0 %v597
    %v628 = vpop.xlane.xlu0 %627
    %629 = vadd.xlane.f32.xlu0 %v598
    %v630 = vpop.xlane.xlu0 %629
    %v631 = vcvt.s32.f32 %v433
    %vm632 = vcmp.eq.f32.partialorder %v600, %v631
    %vm633 = vcmp.eq.f32.partialorder %v602, %v631
    %vm634 = vcmp.eq.f32.partialorder %v604, %v631
    %vm635 = vcmp.eq.f32.partialorder %v606, %v631
    %vm636 = vcmp.eq.f32.partialorder %v608, %v631
    %vm637 = vcmp.eq.f32.partialorder %v610, %v631
    %vm638 = vcmp.eq.f32.partialorder %v612, %v631
    %vm639 = vcmp.eq.f32.partialorder %v614, %v631
    %vm640 = vcmp.eq.f32.partialorder %v616, %v631
    %vm641 = vcmp.eq.f32.partialorder %v618, %v631
    %vm642 = vcmp.eq.f32.partialorder %v620, %v631
    %vm643 = vcmp.eq.f32.partialorder %v622, %v631
    %vm644 = vcmp.eq.f32.partialorder %v624, %v631
    %vm645 = vcmp.eq.f32.partialorder %v626, %v631
    %vm646 = vcmp.eq.f32.partialorder %v628, %v631
    %vm647 = vcmp.eq.f32.partialorder %v630, %v631
    %v648 = vsel %vm632, 1, 0
    %v649 = vsel %vm633, 1, 0
    %v650 = vsel %vm634, 1, 0
    %v651 = vsel %vm635, 1, 0
    %v652 = vsel %vm636, 1, 0
    %v653 = vsel %vm637, 1, 0
    %v654 = vsel %vm638, 1, 0
    %v655 = vsel %vm639, 1, 0
    %v656 = vsel %vm640, 1, 0
    %v657 = vsel %vm641, 1, 0
    %v658 = vsel %vm642, 1, 0
    %v659 = vsel %vm643, 1, 0
    %v660 = vsel %vm644, 1, 0
    %v661 = vsel %vm645, 1, 0
    %v662 = vsel %vm646, 1, 0
    %v663 = vsel %vm647, 1, 0
    %v664 = vcvt.s32.f32 %v648
    %v665 = vcvt.s32.f32 %v649
    %v666 = vcvt.s32.f32 %v650
    %v667 = vcvt.s32.f32 %v651
    %v668 = vcvt.s32.f32 %v652
    %v669 = vcvt.s32.f32 %v653
    %v670 = vcvt.s32.f32 %v654
    %v671 = vcvt.s32.f32 %v655
    %v672 = vcvt.s32.f32 %v656
    %v673 = vcvt.s32.f32 %v657
    %v674 = vcvt.s32.f32 %v658
    %v675 = vcvt.s32.f32 %v659
    %v676 = vcvt.s32.f32 %v660
    %v677 = vcvt.s32.f32 %v661
    %v678 = vcvt.s32.f32 %v662
    %v679 = vcvt.s32.f32 %v663
    %v680 = vmul.f32 %v344, %v454
    %681 = vmatprep.subr.mxu0 0.0
    %682 = vmatpush1.msra.mxu0 %v664
    %683 = vmatprep.subr.mxu0 0.0
    %684 = vmatpush1.msra.mxu0 %v665
    %685 = vmatprep.subr.mxu0 0.0
    %686 = vmatpush1.msra.mxu0 %v666
    %687 = vmatprep.subr.mxu0 0.0
    %688 = vmatpush1.msra.mxu0 %v667
    %689 = vmatprep.subr.mxu0 0.0
    %690 = vmatpush1.msra.mxu0 %v668
    %691 = vmatprep.subr.mxu0 0.0
    %692 = vmatpush1.msra.mxu0 %v669
    %693 = vmatprep.subr.mxu0 0.0
    %694 = vmatpush1.msra.mxu0 %v670
    %695 = vmatprep.subr.mxu0 0.0
    %696 = vmatpush1.msra.mxu0 %v671
    %697 = vmatprep.subr.mxu0 0.0
    %698 = vmatpush1.msra.mxu0 %v672
    %699 = vmatprep.subr.mxu0 0.0
    %700 = vmatpush1.msra.mxu0 %v673
    %701 = vmatprep.subr.mxu0 0.0
    %702 = vmatpush1.msra.mxu0 %v674
    %703 = vmatprep.subr.mxu0 0.0
    %704 = vmatpush1.msra.mxu0 %v675
    %705 = vmatprep.subr.mxu0 0.0
    %706 = vmatpush1.msra.mxu0 %v676
    %707 = vmatprep.subr.mxu0 0.0
    %708 = vmatpush1.msra.mxu0 %v677
    %709 = vmatprep.subr.mxu0 0.0
    %710 = vmatpush1.msra.mxu0 %v678
    %711 = vmatprep.subr.mxu0 0.0
    %712 = vmatpush1.msra.mxu0 %v679
    %713 = vmatprep.subr.mxu0 0.0
    %714 = vmatpush1.msra.mxu0 0.0
    %715 = vmatprep.subr.mxu0 0.0
    %716 = vmatpush1.msra.mxu0 0.0
    %717 = vmatprep.subr.mxu0 0.0
    %718 = vmatpush1.msra.mxu0 0.0
    %719 = vmatprep.subr.mxu0 0.0
    %720 = vmatpush1.msra.mxu0 0.0
    %721 = vmatprep.subr.mxu0 0.0
    %722 = vmatpush1.msra.mxu0 0.0
    %723 = vmatprep.subr.mxu0 0.0
    %724 = vmatpush1.msra.mxu0 0.0
    %725 = vmatprep.subr.mxu0 0.0
    %726 = vmatpush1.msra.mxu0 0.0
    %727 = vmatprep.subr.mxu0 0.0
    %728 = vmatpush1.msra.mxu0 0.0
    %729 = vmatprep.subr.mxu0 0.0
    %730 = vmatpush1.msra.mxu0 0.0
    %731 = vmatprep.subr.mxu0 0.0
    %732 = vmatpush1.msra.mxu0 0.0
    %733 = vmatprep.subr.mxu0 0.0
    %734 = vmatpush1.msra.mxu0 0.0
    %735 = vmatprep.subr.mxu0 0.0
    %736 = vmatpush1.msra.mxu0 0.0
    %737 = vmatprep.subr.mxu0 0.0
    %738 = vmatpush1.msra.mxu0 0.0
    %739 = vmatprep.subr.mxu0 0.0
    %740 = vmatpush1.msra.mxu0 0.0
    %741 = vmatprep.subr.mxu0 0.0
    %742 = vmatpush1.msra.mxu0 0.0
    %743 = vmatprep.subr.mxu0 0.0
    %744 = vmatpush1.msra.mxu0 0.0
    %745 = vmatprep.mubr.f32.mxu0 0.0
    %746 = vmatmul.mubr.f32.gmra.mrb[0].mxu0 %v680
    %v747 = vpop.f32.mrb[0].mxu0
    %v748 = vadd.f32 0.0, %v747
    %v749 = vpop.f32.mrb[0].mxu0
    %750 = vdwg.mxu0
    %751 = vrot.lane.b32.xlu0 %v748, 1
    %v752 = vpop.permute.xlu0 %751
    %v753 = vadd.s32 %v433, 4294967295
    %vm754 = vcmp.ge.s32.totalorder %v753, 0
    %vm755 = vcmp.lt.s32.totalorder %v753, 128
    %vm756 = vmand %vm754, %vm755
    %v757 = vsel %vm756, 1, 0
    %vm758 = vcmp.eq.s32.totalorder %v757, 1
    %v759 = vsel %vm758, %v752, 0.0
    %760 = vrot.lane.b32.xlu0 %v748, 127
    %v761 = vpop.permute.xlu0 %760
    %v762 = vadd.s32 %v433, 1
    %vm763 = vcmp.ge.s32.totalorder %v762, 0
    %vm764 = vcmp.lt.s32.totalorder %v762, 128
    %vm765 = vmand %vm763, %vm764
    %v766 = vsel %vm765, 1, 0
    %vm767 = vcmp.eq.s32.totalorder %v766, 1
    %v768 = vsel %vm767, %v761, 0.0
    %v769 = vld [vmem:[#allocation12] sm:$0xff]
    %v770 = vld [vmem:[#allocation14] sm:$0xff]
    %772 = vset.pattern.permute.xlu0 0
    %773 = vperm.xlu0 %772, %v770
    %v774 = vpop.permute.xlu0 %773
    %vm776 = vcmask 195584
    %v778 = vsel %vm776, %v769, 0
    %780 = vmatprep.subr.mxu0 0.0
    %781 = vmatpush1.msra.mxu0 %v759
    %782 = vmatprep.subr.mxu0 0.0
    %783 = vmatpush1.msra.mxu0 %v748
    %784 = vmatprep.subr.mxu0 0.0
    %785 = vmatpush1.msra.mxu0 %v768
    %786 = vmatprep.subr.mxu0 0.0
    %787 = vmatpush1.msra.mxu0 0.0
    %788 = vmatprep.subr.mxu0 0.0
    %789 = vmatpush1.msra.mxu0 0.0
    %790 = vmatprep.subr.mxu0 0.0
    %791 = vmatpush1.msra.mxu0 0.0
    %792 = vmatprep.subr.mxu0 0.0
    %793 = vmatpush1.msra.mxu0 0.0
    %794 = vmatprep.subr.mxu0 0.0
    %795 = vmatpush1.msra.mxu0 0.0
    %796 = vmatprep.subr.mxu0 0.0
    %797 = vmatpush1.msra.mxu0 0.0
    %798 = vmatprep.subr.mxu0 0.0
    %799 = vmatpush1.msra.mxu0 0.0
    %800 = vmatprep.subr.mxu0 0.0
    %801 = vmatpush1.msra.mxu0 0.0
    %802 = vmatprep.subr.mxu0 0.0
    %803 = vmatpush1.msra.mxu0 0.0
    %804 = vmatprep.subr.mxu0 0.0
    %805 = vmatpush1.msra.mxu0 0.0
    %806 = vmatprep.subr.mxu0 0.0
    %807 = vmatpush1.msra.mxu0 0.0
    %808 = vmatprep.subr.mxu0 0.0
    %809 = vmatpush1.msra.mxu0 0.0
    %810 = vmatprep.subr.mxu0 0.0
    %811 = vmatpush1.msra.mxu0 0.0
    %812 = vmatprep.subr.mxu0 0.0
    %813 = vmatpush1.msra.mxu0 0.0
    %814 = vmatprep.subr.mxu0 0.0
    %815 = vmatpush1.msra.mxu0 0.0
    %816 = vmatprep.subr.mxu0 0.0
    %817 = vmatpush1.msra.mxu0 0.0
    %818 = vmatprep.subr.mxu0 0.0
    %819 = vmatpush1.msra.mxu0 0.0
    %820 = vmatprep.subr.mxu0 0.0
    %821 = vmatpush1.msra.mxu0 0.0
    %822 = vmatprep.subr.mxu0 0.0
    %823 = vmatpush1.msra.mxu0 0.0
    %824 = vmatprep.subr.mxu0 0.0
    %825 = vmatpush1.msra.mxu0 0.0
    %826 = vmatprep.subr.mxu0 0.0
    %827 = vmatpush1.msra.mxu0 0.0
    %828 = vmatprep.subr.mxu0 0.0
    %829 = vmatpush1.msra.mxu0 0.0
    %830 = vmatprep.subr.mxu0 0.0
    %831 = vmatpush1.msra.mxu0 0.0
    %832 = vmatprep.subr.mxu0 0.0
    %833 = vmatpush1.msra.mxu0 0.0
    %834 = vmatprep.subr.mxu0 0.0
    %835 = vmatpush1.msra.mxu0 0.0
    %836 = vmatprep.subr.mxu0 0.0
    %837 = vmatpush1.msra.mxu0 0.0
    %838 = vmatprep.subr.mxu0 0.0
    %839 = vmatpush1.msra.mxu0 0.0
    %840 = vmatprep.subr.mxu0 0.0
    %841 = vmatpush1.msra.mxu0 0.0
    %842 = vmatprep.subr.mxu0 0.0
    %843 = vmatpush1.msra.mxu0 0.0
    %844 = vmatprep.mubr.f32.mxu0 0.0
    %845 = vmatmul.mubr.f32.gmra.mrb[0].mxu0 %v778
    %v846 = vpop.f32.mrb[0].mxu0
    %v847 = vadd.f32 %v774, %v846
    %v848 = vpop.f32.mrb[0].mxu0
    %849 = vdwg.mxu0
    %v850 = vmax.f32 %v847, 0.0
    %851 = vrot.lane.b32.xlu0 %v850, 1
    %v852 = vpop.permute.xlu0 %851
    %v853 = vsel %vm758, %v852, 0.0
    %854 = vrot.lane.b32.xlu0 %v850, 127
    %v855 = vpop.permute.xlu0 %854
    %v856 = vsel %vm767, %v855, 0.0
    %v857 = vld [vmem:[%s9] sm:$0xff]
    %v858 = vld [vmem:[%s10] sm:$0xff]
    %860 = vset.pattern.permute.xlu0 0
    %861 = vperm.xlu0 %860, %v858
    %v862 = vpop.permute.xlu0 %861
    %v865 = vsel %vm776, %v857, 0
    %867 = vmatprep.subr.mxu0 0.0
    %868 = vmatpush1.msra.mxu0 %v853
    %869 = vmatprep.subr.mxu0 0.0
    %870 = vmatpush1.msra.mxu0 %v850
    %871 = vmatprep.subr.mxu0 0.0
    %872 = vmatpush1.msra.mxu0 %v856
    %873 = vmatprep.subr.mxu0 0.0
    %874 = vmatpush1.msra.mxu0 0.0
    %875 = vmatprep.subr.mxu0 0.0
    %876 = vmatpush1.msra.mxu0 0.0
    %877 = vmatprep.subr.mxu0 0.0
    %878 = vmatpush1.msra.mxu0 0.0
    %879 = vmatprep.subr.mxu0 0.0
    %880 = vmatpush1.msra.mxu0 0.0
    %881 = vmatprep.subr.mxu0 0.0
    %882 = vmatpush1.msra.mxu0 0.0
    %883 = vmatprep.subr.mxu0 0.0
    %884 = vmatpush1.msra.mxu0 0.0
    %885 = vmatprep.subr.mxu0 0.0
    %886 = vmatpush1.msra.mxu0 0.0
    %887 = vmatprep.subr.mxu0 0.0
    %888 = vmatpush1.msra.mxu0 0.0
    %889 = vmatprep.subr.mxu0 0.0
    %890 = vmatpush1.msra.mxu0 0.0
    %891 = vmatprep.subr.mxu0 0.0
    %892 = vmatpush1.msra.mxu0 0.0
    %893 = vmatprep.subr.mxu0 0.0
    %894 = vmatpush1.msra.mxu0 0.0
    %895 = vmatprep.subr.mxu0 0.0
    %896 = vmatpush1.msra.mxu0 0.0
    %897 = vmatprep.subr.mxu0 0.0
    %898 = vmatpush1.msra.mxu0 0.0
    %899 = vmatprep.subr.mxu0 0.0
    %900 = vmatpush1.msra.mxu0 0.0
    %901 = vmatprep.subr.mxu0 0.0
    %902 = vmatpush1.msra.mxu0 0.0
    %903 = vmatprep.subr.mxu0 0.0
    %904 = vmatpush1.msra.mxu0 0.0
    %905 = vmatprep.subr.mxu0 0.0
    %906 = vmatpush1.msra.mxu0 0.0
    %907 = vmatprep.subr.mxu0 0.0
    %908 = vmatpush1.msra.mxu0 0.0
    %909 = vmatprep.subr.mxu0 0.0
    %910 = vmatpush1.msra.mxu0 0.0
    %911 = vmatprep.subr.mxu0 0.0
    %912 = vmatpush1.msra.mxu0 0.0
    %913 = vmatprep.subr.mxu0 0.0
    %914 = vmatpush1.msra.mxu0 0.0
    %915 = vmatprep.subr.mxu0 0.0
    %916 = vmatpush1.msra.mxu0 0.0
    %917 = vmatprep.subr.mxu0 0.0
    %918 = vmatpush1.msra.mxu0 0.0
    %919 = vmatprep.subr.mxu0 0.0
    %920 = vmatpush1.msra.mxu0 0.0
    %921 = vmatprep.subr.mxu0 0.0
    %922 = vmatpush1.msra.mxu0 0.0
    %923 = vmatprep.subr.mxu0 0.0
    %924 = vmatpush1.msra.mxu0 0.0
    %925 = vmatprep.subr.mxu0 0.0
    %926 = vmatpush1.msra.mxu0 0.0
    %927 = vmatprep.subr.mxu0 0.0
    %928 = vmatpush1.msra.mxu0 0.0
    %929 = vmatprep.subr.mxu0 0.0
    %930 = vmatpush1.msra.mxu0 0.0
    %931 = vmatprep.mubr.f32.mxu0 0.0
    %932 = vmatmul.mubr.f32.gmra.mrb[0].mxu0 %v865
    %v933 = vpop.f32.mrb[0].mxu0
    %v934 = vadd.f32 %v862, %v933
    %v935 = vpop.f32.mrb[0].mxu0
    %936 = vdwg.mxu0
    %937 = vmatprep.subr.mxu0 0.0
    %938 = vmatpush1.xpose.msra.mxu0 %v664
    %939 = vmatprep.subr.mxu0 0.0
    %940 = vmatpush1.xpose.msra.mxu0 %v665
    %941 = vmatprep.subr.mxu0 0.0
    %942 = vmatpush1.xpose.msra.mxu0 %v666
    %943 = vmatprep.subr.mxu0 0.0
    %944 = vmatpush1.xpose.msra.mxu0 %v667
    %945 = vmatprep.subr.mxu0 0.0
    %946 = vmatpush1.xpose.msra.mxu0 %v668
    %947 = vmatprep.subr.mxu0 0.0
    %948 = vmatpush1.xpose.msra.mxu0 %v669
    %949 = vmatprep.subr.mxu0 0.0
    %950 = vmatpush1.xpose.msra.mxu0 %v670
    %951 = vmatprep.subr.mxu0 0.0
    %952 = vmatpush1.xpose.msra.mxu0 %v671
    %953 = vmatprep.subr.mxu0 0.0
    %954 = vmatpush1.xpose.msra.mxu0 %v672
    %955 = vmatprep.subr.mxu0 0.0
    %956 = vmatpush1.xpose.msra.mxu0 %v673
    %957 = vmatprep.subr.mxu0 0.0
    %958 = vmatpush1.xpose.msra.mxu0 %v674
    %959 = vmatprep.subr.mxu0 0.0
    %960 = vmatpush1.xpose.msra.mxu0 %v675
    %961 = vmatprep.subr.mxu0 0.0
    %962 = vmatpush1.xpose.msra.mxu0 %v676
    %963 = vmatprep.subr.mxu0 0.0
    %964 = vmatpush1.xpose.msra.mxu0 %v677
    %965 = vmatprep.subr.mxu0 0.0
    %966 = vmatpush1.xpose.msra.mxu0 %v678
    %967 = vmatprep.subr.mxu0 0.0
    %968 = vmatpush1.xpose.msra.mxu0 %v679
    %969 = vmatprep.subr.mxu0 0.0
    %970 = vmatpush1.xpose.msra.mxu0 0.0
    %971 = vmatprep.subr.mxu0 0.0
    %972 = vmatpush1.xpose.msra.mxu0 0.0
    %973 = vmatprep.subr.mxu0 0.0
    %974 = vmatpush1.xpose.msra.mxu0 0.0
    %975 = vmatprep.subr.mxu0 0.0
    %976 = vmatpush1.xpose.msra.mxu0 0.0
    %977 = vmatprep.subr.mxu0 0.0
    %978 = vmatpush1.xpose.msra.mxu0 0.0
    %979 = vmatprep.subr.mxu0 0.0
    %980 = vmatpush1.xpose.msra.mxu0 0.0
    %981 = vmatprep.subr.mxu0 0.0
    %982 = vmatpush1.xpose.msra.mxu0 0.0
    %983 = vmatprep.subr.mxu0 0.0
    %984 = vmatpush1.xpose.msra.mxu0 0.0
    %985 = vmatprep.subr.mxu0 0.0
    %986 = vmatpush1.xpose.msra.mxu0 0.0
    %987 = vmatprep.subr.mxu0 0.0
    %988 = vmatpush1.xpose.msra.mxu0 0.0
    %989 = vmatprep.subr.mxu0 0.0
    %990 = vmatpush1.xpose.msra.mxu0 0.0
    %991 = vmatprep.subr.mxu0 0.0
    %992 = vmatpush1.xpose.msra.mxu0 0.0
    %993 = vmatprep.subr.mxu0 0.0
    %994 = vmatpush1.xpose.msra.mxu0 0.0
    %995 = vmatprep.subr.mxu0 0.0
    %996 = vmatpush1.xpose.msra.mxu0 0.0
    %997 = vmatprep.subr.mxu0 0.0
    %998 = vmatpush1.xpose.msra.mxu0 0.0
    %999 = vmatprep.subr.mxu0 0.0
    %1000 = vmatpush1.xpose.msra.mxu0 0.0
    %1001 = vmatprep.mubr.f32.mxu0 0.0
    %1002 = vmatmul.mubr.f32.gmra.mrb[0].mxu0 %v934
    %v1003 = vpop.f32.mrb[0].mxu0
    %v1004 = vadd.f32 0.0, %v1003
    %v1005 = vpop.f32.mrb[0].mxu0
    %1006 = vdwg.mxu0
    %v1007 = vld [vmem:[%s11] sm:$0xff]
    %v1008 = vld [vmem:[%s12] sm:$0xff]
    %1010 = vset.pattern.permute.xlu0 0
    %1011 = vperm.xlu0 %1010, %v1008
    %v1012 = vpop.permute.xlu0 %1011
    %v1015 = vsel %vm164, %v1007, 0
    %1017 = vmatprep.subr.mxu0 0.0
    %1018 = vmatpush1.msra.mxu0 %v344
    %1019 = vmatprep.subr.mxu0 0.0
    %1020 = vmatpush1.msra.mxu0 %v1004
    %1021 = vmatprep.subr.mxu0 0.0
    %1022 = vmatpush1.msra.mxu0 0.0
    %1023 = vmatprep.subr.mxu0 0.0
    %1024 = vmatpush1.msra.mxu0 0.0
    %1025 = vmatprep.subr.mxu0 0.0
    %1026 = vmatpush1.msra.mxu0 0.0
    %1027 = vmatprep.subr.mxu0 0.0
    %1028 = vmatpush1.msra.mxu0 0.0
    %1029 = vmatprep.subr.mxu0 0.0
    %1030 = vmatpush1.msra.mxu0 0.0
    %1031 = vmatprep.subr.mxu0 0.0
    %1032 = vmatpush1.msra.mxu0 0.0
    %1033 = vmatprep.subr.mxu0 0.0
    %1034 = vmatpush1.msra.mxu0 0.0
    %1035 = vmatprep.subr.mxu0 0.0
    %1036 = vmatpush1.msra.mxu0 0.0
    %1037 = vmatprep.subr.mxu0 0.0
    %1038 = vmatpush1.msra.mxu0 0.0
    %1039 = vmatprep.subr.mxu0 0.0
    %1040 = vmatpush1.msra.mxu0 0.0
    %1041 = vmatprep.subr.mxu0 0.0
    %1042 = vmatpush1.msra.mxu0 0.0
    %1043 = vmatprep.subr.mxu0 0.0
    %1044 = vmatpush1.msra.mxu0 0.0
    %1045 = vmatprep.subr.mxu0 0.0
    %1046 = vmatpush1.msra.mxu0 0.0
    %1047 = vmatprep.subr.mxu0 0.0
    %1048 = vmatpush1.msra.mxu0 0.0
    %1049 = vmatprep.subr.mxu0 0.0
    %1050 = vmatpush1.msra.mxu0 0.0
    %1051 = vmatprep.subr.mxu0 0.0
    %1052 = vmatpush1.msra.mxu0 0.0
    %1053 = vmatprep.subr.mxu0 0.0
    %1054 = vmatpush1.msra.mxu0 0.0
    %1055 = vmatprep.subr.mxu0 0.0
    %1056 = vmatpush1.msra.mxu0 0.0
    %1057 = vmatprep.subr.mxu0 0.0
    %1058 = vmatpush1.msra.mxu0 0.0
    %1059 = vmatprep.subr.mxu0 0.0
    %1060 = vmatpush1.msra.mxu0 0.0
    %1061 = vmatprep.subr.mxu0 0.0
    %1062 = vmatpush1.msra.mxu0 0.0
    %1063 = vmatprep.subr.mxu0 0.0
    %1064 = vmatpush1.msra.mxu0 0.0
    %1065 = vmatprep.subr.mxu0 0.0
    %1066 = vmatpush1.msra.mxu0 0.0
    %1067 = vmatprep.subr.mxu0 0.0
    %1068 = vmatpush1.msra.mxu0 0.0
    %1069 = vmatprep.subr.mxu0 0.0
    %1070 = vmatpush1.msra.mxu0 0.0
    %1071 = vmatprep.subr.mxu0 0.0
    %1072 = vmatpush1.msra.mxu0 0.0
    %1073 = vmatprep.subr.mxu0 0.0
    %1074 = vmatpush1.msra.mxu0 0.0
    %1075 = vmatprep.subr.mxu0 0.0
    %1076 = vmatpush1.msra.mxu0 0.0
    %1077 = vmatprep.subr.mxu0 0.0
    %1078 = vmatpush1.msra.mxu0 0.0
    %1079 = vmatprep.subr.mxu0 0.0
    %1080 = vmatpush1.msra.mxu0 0.0
    %1081 = vmatprep.mubr.f32.mxu0 0.0
    %1082 = vmatmul.mubr.f32.gmra.mrb[0].mxu0 %v1015
    %v1083 = vpop.f32.mrb[0].mxu0
    %v1084 = vadd.f32 %v1012, %v1083
    %v1085 = vpop.f32.mrb[0].mxu0
    %1086 = vdwg.mxu0
    %v1087 = vrot.slane %v1084, 4
    %v1088 = vmax.f32 %v1084, %v1087
    %v1089 = vrot.slane %v1088, 2
    %v1090 = vmax.f32 %v1088, %v1089
    %v1091 = vrot.slane %v1090, 1
    %v1092 = vmax.f32 %v1090, %v1091
    %v1093 = vsub.f32 %v1084, %v1092
    %v1094 = vmul.f32 %v1093, 1.442695
    %v1095 = vpow.pop %v1094
    %v1096 = vrot.slane %v1095, 4
    %v1097 = vadd.f32 %v1095, %v1096
    %v1098 = vrot.slane %v1097, 2
    %v1099 = vadd.f32 %v1097, %v1098
    %v1100 = vrot.slane %v1099, 1
    %v1101 = vadd.f32 %v1099, %v1100
    %v1102 = vlog2.pop %v1101
    %v1103 = vmul.f32 %v1102, 0.6931472
    %v1104 = vsub.f32 %v1093, %v1103
    %1105 = vst [vmem:[#allocation15] sm:$0xff] %v1104
    // Predicated region
    $region82: #{_lambda_.1} parent=1 // pred_check
      _
    $region83: #{_lambda_.1} parent=1 // pred_check_branch
      %1107 = sbr.rel (0) target = $region85
    $region84: #{_lambda_.1} parent=1 // pred_region
      %s1109 = ssub.s32 128, 128
      %1110 = vsyncadd [#allocation5], %s1109
      %s1112 = sshll.u32 [#allocation15], 4
      %s1113 = int_to_ptr.vmem [resolvable:$true] %s1112
      %1115 = dma.vmem_to_hbm [thread:$0]  %s1113, 128, %s13, [#allocation5]
    $region85: #{_lambda_.1} parent=1 // pred_fallthru
      _
    // Predicated region
    $region86: #{_lambda_.1} parent=1 // pred_check
      _
    $region87: #{_lambda_.1} parent=1 // pred_check_branch
      %1117 = sbr.rel (0) target = $region89
    $region88: #{_lambda_.1} parent=1 // pred_region
      %1118 = dma.done [#allocation5], 128
    $region89: #{_lambda_.1} parent=1 // pred_fallthru
      _
    %1119 = vsyncpa [#allocation4], 1
    %1120 = vsyncpa [#allocation7], 1
    %1121 = vsyncpa [#allocation10], 1
    %1122 = vsyncpa [#allocation13], 1
    %1123 = vsyncpa [#allocation5], 1

</llo_original>
